<compile_context>
chip_gen: v7x
topology: tpu7x:2x2x1
jax: 0.10.0
libtpu: 0.0.40
codegen_flags: <defaults>
</compile_context>

<pallas_src>
import functools

import jax
import jax.numpy as jnp
from jax import lax
from jax.experimental import pallas as pl
from jax.experimental.pallas import tpu as pltpu


def _round_up(x, m):
    return ((x + m - 1) // m) * m


def _convnext_kernel(x_ref, lh_ref, rh_ref, dww_ref, dwb_ref, lnw_ref, lnb_ref,
                     w1_ref, b1_ref, w2_ref, b2_ref, gamma_ref, o_ref, xp_ref):
    # x_ref  : (1, tT, C)  current time tile (channels-last)
    # lh_ref : (1, 8, C)   8-row block just left of the tile (rows 5:8 = halo)
    # rh_ref : (1, 8, C)   8-row block just right of the tile (rows 0:3 = halo)
    # dww    : (7, C), dwb: (1, C)     depthwise conv weight / bias
    # lnw/lnb: (1, C)                  LayerNorm affine
    # w1     : (C, I) bf16, b1: (1, I) pwconv1
    # w2     : (I, C) bf16, b2: (1, C) pwconv2
    # gamma  : (1, C)                  layer scale
    # o_ref  : (1, tT, C)
    # xp_ref : (tT + 16, C) f32 VMEM scratch for the haloed window
    j = pl.program_id(1)
    n_t = pl.num_programs(1)

    center = x_ref[0].astype(jnp.float32)             # (tT, C)
    tT, C = center.shape

    # Halo rows, zeroed at sequence edges (reproduces Conv1d padding=3 zeros).
    lmask = (j > 0).astype(jnp.float32)
    rmask = (j < n_t - 1).astype(jnp.float32)
    left = lh_ref[0][5:8, :].astype(jnp.float32) * lmask    # (3, C)
    right = rh_ref[0][0:3, :].astype(jnp.float32) * rmask   # (3, C)

    # Assemble the padded window in scratch; the big center store lands at the
    # 8-aligned sublane offset 8 (aligned full-tile copy, halos are tiny).
    xp_ref[5:8, :] = left
    xp_ref[8:8 + tT, :] = center
    xp_ref[8 + tT:11 + tT, :] = right
    xp = xp_ref[...]                                   # (tT + 16, C)

    # Depthwise conv1d, kernel=7 (static unroll, VPU).
    dww = dww_ref[...].astype(jnp.float32)             # (7, C)
    y = xp[5:5 + tT, :] * dww[0][None, :]
    for k in range(1, 7):
        y = y + xp[5 + k:5 + k + tT, :] * dww[k][None, :]
    y = y + dwb_ref[...].astype(jnp.float32)

    # LayerNorm over channels, eps=1e-6 (biased variance, matches PyTorch).
    mean = jnp.mean(y, axis=-1, keepdims=True)
    cen = y - mean
    var = jnp.mean(cen * cen, axis=-1, keepdims=True)
    yn = cen * lax.rsqrt(var + 1e-6)
    yn = yn * lnw_ref[...].astype(jnp.float32) + lnb_ref[...].astype(jnp.float32)

    # pwconv1 -> GELU (exact erf, nn.GELU default) -> pwconv2; bf16 MXU, f32 acc.
    h = jnp.dot(yn.astype(jnp.bfloat16), w1_ref[...],
                preferred_element_type=jnp.float32) + b1_ref[...]
    h = 0.5 * h * (1.0 + lax.erf(h * jnp.float32(0.7071067811865476)))
    out = jnp.dot(h.astype(jnp.bfloat16), w2_ref[...],
                  preferred_element_type=jnp.float32) + b2_ref[...]

    # Layer scale + residual (residual == center tile, no duplicate DMA).
    out = out * gamma_ref[...].astype(jnp.float32)
    o_ref[0] = (center + out).astype(o_ref.dtype)


@functools.partial(jax.jit, static_argnames=("time_tile",))
def convnext_block(x, params, *, time_tile=256):
    """x: (B, C, T) float32 (PyTorch NCT convention). Returns (B, C, T)."""
    dw_w, dw_b, ln_w, ln_b, w1, b1, w2, b2, gamma = params
    B, C, T = x.shape
    I = w1.shape[1]

    # Time tile (multiple of 8); pad T up to a tile multiple (zeros match the
    # conv's own zero padding; the padded rows are sliced off the output).
    tT = int(min(time_tile, _round_up(T, 8)))
    tT = max(8, (tT // 8) * 8)
    Tp = _round_up(T, tT)
    nT = Tp // tT
    tb = tT // 8
    nblk8 = Tp // 8

    # NCT -> NTC so channels map to lanes / MXU contraction dim. The zero pad
    # fuses into this transpose copy in XLA (no extra HBM round trip).
    x_ntc = jnp.transpose(x, (0, 2, 1))
    if Tp != T:
        x_ntc = jnp.pad(x_ntc, ((0, 0), (0, Tp - T), (0, 0)))

    # bf16 weights for the MXU; small params reshaped lane-dense (1, C)/(1, I).
    w1b = w1.astype(jnp.bfloat16)
    w2b = w2.astype(jnp.bfloat16)
    dw_b2 = dw_b.reshape(1, C)
    ln_w2 = ln_w.reshape(1, C)
    ln_b2 = ln_b.reshape(1, C)
    b1_2 = b1.reshape(1, I)
    b2_2 = b2.reshape(1, C)
    gamma2 = gamma.reshape(1, C)

    def full(shp):
        return pl.BlockSpec(shp, lambda b, j: (0,) * len(shp))

    center_spec = pl.BlockSpec((1, tT, C), lambda b, j: (b, j, 0))
    left_spec = pl.BlockSpec((1, 8, C),
                             lambda b, j: (b, jnp.maximum(j * tb - 1, 0), 0))
    right_spec = pl.BlockSpec((1, 8, C),
                              lambda b, j: (b, jnp.minimum((j + 1) * tb, nblk8 - 1), 0))

    # Rough VMEM budget -> explicit limit (floor 32 MiB, cap 48 MiB so v7x's
    # 64 MiB physical keeps headroom).
    weight_bytes = 2 * (C * I + I * C) * 2                  # bf16 pw weights (dbl-buf)
    act_bytes = 2 * 2 * tT * C * 4 + 2 * 2 * 8 * C * 4      # in/out tiles + halos
    scratch_bytes = (tT + 16) * C * 4
    live_bytes = tT * I * 4 + 4 * tT * C * 4                # in-flight f32 temps
    est = weight_bytes + act_bytes + scratch_bytes + live_bytes + 2 * (14 * C + I) * 4
    vmem_limit = int(min(max(2 * est, 32 * 1024 * 1024), 48 * 1024 * 1024))

    out_ntc = pl.pallas_call(
        _convnext_kernel,
        out_shape=jax.ShapeDtypeStruct((B, Tp, C), x.dtype),
        grid_spec=pltpu.PrefetchScalarGridSpec(
            num_scalar_prefetch=0,
            grid=(B, nT),
            in_specs=[
                center_spec,        # x tile (also the residual)
                left_spec,          # left halo carrier block
                right_spec,         # right halo carrier block
                full((7, C)),       # dw weight
                full((1, C)),       # dw bias
                full((1, C)),       # ln weight
                full((1, C)),       # ln bias
                full((C, I)),       # pwconv1 weight (bf16)
                full((1, I)),       # pwconv1 bias
                full((I, C)),       # pwconv2 weight (bf16)
                full((1, C)),       # pwconv2 bias
                full((1, C)),       # gamma
            ],
            out_specs=pl.BlockSpec((1, tT, C), lambda b, j: (b, j, 0)),
            scratch_shapes=[pltpu.VMEM((tT + 16, C), jnp.float32)],
        ),
        compiler_params=pltpu.CompilerParams(
            dimension_semantics=("parallel", "parallel"),
            vmem_limit_bytes=vmem_limit),
    )(x_ntc, x_ntc, x_ntc, dw_w, dw_b2, ln_w2, ln_b2, w1b, b1_2, w2b, b2_2, gamma2)

    out_ntc = out_ntc[:, :T, :]
    return jnp.transpose(out_ntc, (0, 2, 1))               # back to (B, C, T)


def init_params(key, dim, intermediate_dim, layer_scale_init_value):
    """Deterministic synthetic parameter init matching the module's shapes.

    dwconv.weight (dim, 1, 7) is stored here as (7, dim) (tap, channel);
    pwconv weights are stored transposed (in_features, out_features).
    """
    ks = jax.random.split(key, 6)
    dw_w = jax.random.normal(ks[0], (7, dim), jnp.float32) * 0.1
    dw_b = jax.random.normal(ks[1], (dim,), jnp.float32) * 0.05
    ln_w = jnp.ones((dim,), jnp.float32)
    ln_b = jnp.zeros((dim,), jnp.float32)
    w1 = jax.random.normal(ks[2], (dim, intermediate_dim), jnp.float32) * (1.0 / dim ** 0.5)
    b1 = jax.random.normal(ks[3], (intermediate_dim,), jnp.float32) * 0.05
    w2 = jax.random.normal(ks[4], (intermediate_dim, dim), jnp.float32) * (1.0 / intermediate_dim ** 0.5)
    b2 = jax.random.normal(ks[5], (dim,), jnp.float32) * 0.05
    gamma = jnp.full((dim,), layer_scale_init_value, jnp.float32)
    return (dw_w, dw_b, ln_w, ln_b, w1, b1, w2, b2, gamma)


def _reference(x, params):
    """Pure-JAX f32 reference of the PyTorch forward."""
    dw_w, dw_b, ln_w, ln_b, w1, b1, w2, b2, gamma = params
    B, C, T = x.shape
    x_ntc = jnp.transpose(x, (0, 2, 1))
    xp = jnp.pad(x_ntc, ((0, 0), (3, 3), (0, 0)))
    y = sum(xp[:, k:k + T, :] * dw_w[k][None, None, :] for k in range(7)) + dw_b
    mean = jnp.mean(y, axis=-1, keepdims=True)
    var = jnp.mean((y - mean) ** 2, axis=-1, keepdims=True)
    yn = (y - mean) / jnp.sqrt(var + 1e-6) * ln_w + ln_b
    h = yn @ w1 + b1
    h = 0.5 * h * (1.0 + lax.erf(h / jnp.sqrt(2.0)))
    out = h @ w2 + b2
    out = out * gamma
    return x + jnp.transpose(out, (0, 2, 1))


if __name__ == "__main__":
    dim = 64
    intermediate_dim = 128
    layer_scale_init_value = 1.0 / 6.0

    key = jax.random.PRNGKey(0)
    kx, kx2, kp = jax.random.split(key, 3)
    params = init_params(kp, dim, intermediate_dim, layer_scale_init_value)

    # Multi-tile case: 3 time tiles, T not a multiple of the tile -> exercises
    # time padding, both edge halos and an interior tile.
    B, T = 2, 88
    x = jax.random.normal(kx, (B, dim, T), jnp.float32)      # (B, C, T) NCT
    out = jax.block_until_ready(convnext_block(x, params, time_tile=32))
    ref = _reference(x, params)
    assert out.shape == (B, dim, T)
    # bf16 MXU matmuls (f32 accumulation) -> relaxed tolerance vs f32 reference.
    assert jnp.allclose(out, ref, atol=3e-2, rtol=3e-2), float(jnp.max(jnp.abs(out - ref)))

    # Single-tile case (nT == 1: both halos masked to zero).
    x2 = jax.random.normal(kx2, (B, dim, 32), jnp.float32)
    out2 = jax.block_until_ready(convnext_block(x2, params, time_tile=64))
    ref2 = _reference(x2, params)
    assert jnp.allclose(out2, ref2, atol=3e-2, rtol=3e-2), float(jnp.max(jnp.abs(out2 - ref2)))

    print("KERNEL_OK")
</pallas_src>

<mosaic_0001>
module attributes {stable_mosaic.version = 11 : i64} {
  func.func @_convnext_kernel(%arg0: i32, %arg1: i32, %arg2: memref<1x32x64xf32, #tpu.memory_space<vmem>>, %arg3: memref<1x8x64xf32, #tpu.memory_space<vmem>>, %arg4: memref<1x8x64xf32, #tpu.memory_space<vmem>>, %arg5: memref<7x64xf32, #tpu.memory_space<vmem>>, %arg6: memref<1x64xf32, #tpu.memory_space<vmem>>, %arg7: memref<1x64xf32, #tpu.memory_space<vmem>>, %arg8: memref<1x64xf32, #tpu.memory_space<vmem>>, %arg9: memref<64x128xbf16, #tpu.memory_space<vmem>>, %arg10: memref<1x128xf32, #tpu.memory_space<vmem>>, %arg11: memref<128x64xbf16, #tpu.memory_space<vmem>>, %arg12: memref<1x64xf32, #tpu.memory_space<vmem>>, %arg13: memref<1x64xf32, #tpu.memory_space<vmem>>, %arg14: memref<1x32x64xf32, #tpu.memory_space<vmem>>, %arg15: memref<48x64xf32, #tpu.memory_space<vmem>>) attributes {dimension_semantics = [#tpu.dimension_semantics<parallel>, #tpu.dimension_semantics<parallel>], iteration_bounds = array<i64: 2, 3>, scalar_prefetch = 0 : i64, scratch_operands = 1 : i64, tpu.core_type = #tpu.core_type<tc>, window_params = [{transform_indices = @transform_0, window_bounds = array<i64: 1, 32, 64>}, {transform_indices = @transform_1, window_bounds = array<i64: 1, 8, 64>}, {transform_indices = @transform_2, window_bounds = array<i64: 1, 8, 64>}, {pipeline_mode = #tpu.pipeline_mode<synchronous>, transform_indices = @transform_3, window_bounds = array<i64: 7, 64>}, {pipeline_mode = #tpu.pipeline_mode<synchronous>, transform_indices = @transform_4, window_bounds = array<i64: 1, 64>}, {pipeline_mode = #tpu.pipeline_mode<synchronous>, transform_indices = @transform_5, window_bounds = array<i64: 1, 64>}, {pipeline_mode = #tpu.pipeline_mode<synchronous>, transform_indices = @transform_6, window_bounds = array<i64: 1, 64>}, {pipeline_mode = #tpu.pipeline_mode<synchronous>, transform_indices = @transform_7, window_bounds = array<i64: 64, 128>}, {pipeline_mode = #tpu.pipeline_mode<synchronous>, transform_indices = @transform_8, window_bounds = array<i64: 1, 128>}, {pipeline_mode = #tpu.pipeline_mode<synchronous>, transform_indices = @transform_9, window_bounds = array<i64: 128, 64>}, {pipeline_mode = #tpu.pipeline_mode<synchronous>, transform_indices = @transform_10, window_bounds = array<i64: 1, 64>}, {pipeline_mode = #tpu.pipeline_mode<synchronous>, transform_indices = @transform_11, window_bounds = array<i64: 1, 64>}, {transform_indices = @transform_12, window_bounds = array<i64: 1, 32, 64>}]} {
    %c0 = arith.constant 0 : index
    %c0_0 = arith.constant 0 : index
    %c0_1 = arith.constant 0 : index
    %0 = vector.load %arg2[%c0, %c0_0, %c0_1] : memref<1x32x64xf32, #tpu.memory_space<vmem>>, vector<1x32x64xf32>
    %1 = vector.shape_cast %0 : vector<1x32x64xf32> to vector<32x64xf32>
    %c0_i32 = arith.constant 0 : i32
    %2 = arith.cmpi sgt, %arg1, %c0_i32 : i32
    %3 = arith.extui %2 : i1 to i32
    %4 = arith.sitofp %3 : i32 to f32
    %c2_i32 = arith.constant 2 : i32
    %5 = arith.cmpi slt, %arg1, %c2_i32 : i32
    %6 = arith.extui %5 : i1 to i32
    %7 = arith.sitofp %6 : i32 to f32
    %c0_2 = arith.constant 0 : index
    %c0_3 = arith.constant 0 : index
    %c0_4 = arith.constant 0 : index
    %8 = vector.load %arg3[%c0_2, %c0_3, %c0_4] : memref<1x8x64xf32, #tpu.memory_space<vmem>>, vector<1x8x64xf32>
    %9 = vector.shape_cast %8 : vector<1x8x64xf32> to vector<8x64xf32>
    %10 = vector.extract_strided_slice %9 {offsets = [5, 0], sizes = [3, 64], strides = [1, 1]} : vector<8x64xf32> to vector<3x64xf32>
    %11 = vector.broadcast %4 : f32 to vector<3x64xf32>
    %12 = arith.mulf %10, %11 : vector<3x64xf32>
    %c0_5 = arith.constant 0 : index
    %c0_6 = arith.constant 0 : index
    %c0_7 = arith.constant 0 : index
    %13 = vector.load %arg4[%c0_5, %c0_6, %c0_7] : memref<1x8x64xf32, #tpu.memory_space<vmem>>, vector<1x8x64xf32>
    %14 = vector.shape_cast %13 : vector<1x8x64xf32> to vector<8x64xf32>
    %15 = vector.extract_strided_slice %14 {offsets = [0, 0], sizes = [3, 64], strides = [1, 1]} : vector<8x64xf32> to vector<3x64xf32>
    %16 = vector.broadcast %7 : f32 to vector<3x64xf32>
    %17 = arith.mulf %15, %16 : vector<3x64xf32>
    %c5 = arith.constant 5 : index
    %c0_8 = arith.constant 0 : index
    %18 = vector.load %arg15[%c5, %c0_8] : memref<48x64xf32, #tpu.memory_space<vmem>>, vector<3x64xf32>
    tpu.vector_store %arg15[%c5, %c0_8], %12 {strides = array<i32>} : memref<48x64xf32, #tpu.memory_space<vmem>>, vector<3x64xf32>,
    %c8 = arith.constant 8 : index
    %c0_9 = arith.constant 0 : index
    %19 = vector.load %arg15[%c8, %c0_9] : memref<48x64xf32, #tpu.memory_space<vmem>>, vector<32x64xf32>
    tpu.vector_store %arg15[%c8, %c0_9], %1 {strides = array<i32>} : memref<48x64xf32, #tpu.memory_space<vmem>>, vector<32x64xf32>,
    %c40 = arith.constant 40 : index
    %c0_10 = arith.constant 0 : index
    %20 = vector.load %arg15[%c40, %c0_10] : memref<48x64xf32, #tpu.memory_space<vmem>>, vector<3x64xf32>
    tpu.vector_store %arg15[%c40, %c0_10], %17 {strides = array<i32>} : memref<48x64xf32, #tpu.memory_space<vmem>>, vector<3x64xf32>,
    %c0_11 = arith.constant 0 : index
    %c0_12 = arith.constant 0 : index
    %21 = vector.load %arg15[%c0_11, %c0_12] : memref<48x64xf32, #tpu.memory_space<vmem>>, vector<48x64xf32>
    %c0_13 = arith.constant 0 : index
    %c0_14 = arith.constant 0 : index
    %22 = vector.load %arg5[%c0_13, %c0_14] : memref<7x64xf32, #tpu.memory_space<vmem>>, vector<7x64xf32>
    %23 = vector.extract_strided_slice %21 {offsets = [5, 0], sizes = [32, 64], strides = [1, 1]} : vector<48x64xf32> to vector<32x64xf32>
    %24 = vector.extract_strided_slice %22 {offsets = [0, 0], sizes = [1, 64], strides = [1, 1]} : vector<7x64xf32> to vector<1x64xf32>
    %25 = vector.shape_cast %24 : vector<1x64xf32> to vector<64xf32>
    %26 = vector.shape_cast %25 : vector<64xf32> to vector<1x64xf32>
    %27 = vector.broadcast %26 : vector<1x64xf32> to vector<32x64xf32>
    %28 = arith.mulf %23, %27 : vector<32x64xf32>
    %29 = vector.extract_strided_slice %21 {offsets = [6, 0], sizes = [32, 64], strides = [1, 1]} : vector<48x64xf32> to vector<32x64xf32>
    %30 = vector.extract_strided_slice %22 {offsets = [1, 0], sizes = [1, 64], strides = [1, 1]} : vector<7x64xf32> to vector<1x64xf32>
    %31 = vector.shape_cast %30 : vector<1x64xf32> to vector<64xf32>
    %32 = vector.shape_cast %31 : vector<64xf32> to vector<1x64xf32>
    %33 = vector.broadcast %32 : vector<1x64xf32> to vector<32x64xf32>
    %34 = arith.mulf %29, %33 : vector<32x64xf32>
    %35 = arith.addf %28, %34 : vector<32x64xf32>
    %36 = vector.extract_strided_slice %21 {offsets = [7, 0], sizes = [32, 64], strides = [1, 1]} : vector<48x64xf32> to vector<32x64xf32>
    %37 = vector.extract_strided_slice %22 {offsets = [2, 0], sizes = [1, 64], strides = [1, 1]} : vector<7x64xf32> to vector<1x64xf32>
    %38 = vector.shape_cast %37 : vector<1x64xf32> to vector<64xf32>
    %39 = vector.shape_cast %38 : vector<64xf32> to vector<1x64xf32>
    %40 = vector.broadcast %39 : vector<1x64xf32> to vector<32x64xf32>
    %41 = arith.mulf %36, %40 : vector<32x64xf32>
    %42 = arith.addf %35, %41 : vector<32x64xf32>
    %43 = vector.extract_strided_slice %21 {offsets = [8, 0], sizes = [32, 64], strides = [1, 1]} : vector<48x64xf32> to vector<32x64xf32>
    %44 = vector.extract_strided_slice %22 {offsets = [3, 0], sizes = [1, 64], strides = [1, 1]} : vector<7x64xf32> to vector<1x64xf32>
    %45 = vector.shape_cast %44 : vector<1x64xf32> to vector<64xf32>
    %46 = vector.shape_cast %45 : vector<64xf32> to vector<1x64xf32>
    %47 = vector.broadcast %46 : vector<1x64xf32> to vector<32x64xf32>
    %48 = arith.mulf %43, %47 : vector<32x64xf32>
    %49 = arith.addf %42, %48 : vector<32x64xf32>
    %50 = vector.extract_strided_slice %21 {offsets = [9, 0], sizes = [32, 64], strides = [1, 1]} : vector<48x64xf32> to vector<32x64xf32>
    %51 = vector.extract_strided_slice %22 {offsets = [4, 0], sizes = [1, 64], strides = [1, 1]} : vector<7x64xf32> to vector<1x64xf32>
    %52 = vector.shape_cast %51 : vector<1x64xf32> to vector<64xf32>
    %53 = vector.shape_cast %52 : vector<64xf32> to vector<1x64xf32>
    %54 = vector.broadcast %53 : vector<1x64xf32> to vector<32x64xf32>
    %55 = arith.mulf %50, %54 : vector<32x64xf32>
    %56 = arith.addf %49, %55 : vector<32x64xf32>
    %57 = vector.extract_strided_slice %21 {offsets = [10, 0], sizes = [32, 64], strides = [1, 1]} : vector<48x64xf32> to vector<32x64xf32>
    %58 = vector.extract_strided_slice %22 {offsets = [5, 0], sizes = [1, 64], strides = [1, 1]} : vector<7x64xf32> to vector<1x64xf32>
    %59 = vector.shape_cast %58 : vector<1x64xf32> to vector<64xf32>
    %60 = vector.shape_cast %59 : vector<64xf32> to vector<1x64xf32>
    %61 = vector.broadcast %60 : vector<1x64xf32> to vector<32x64xf32>
    %62 = arith.mulf %57, %61 : vector<32x64xf32>
    %63 = arith.addf %56, %62 : vector<32x64xf32>
    %64 = vector.extract_strided_slice %21 {offsets = [11, 0], sizes = [32, 64], strides = [1, 1]} : vector<48x64xf32> to vector<32x64xf32>
    %65 = vector.extract_strided_slice %22 {offsets = [6, 0], sizes = [1, 64], strides = [1, 1]} : vector<7x64xf32> to vector<1x64xf32>
    %66 = vector.shape_cast %65 : vector<1x64xf32> to vector<64xf32>
    %67 = vector.shape_cast %66 : vector<64xf32> to vector<1x64xf32>
    %68 = vector.broadcast %67 : vector<1x64xf32> to vector<32x64xf32>
    %69 = arith.mulf %64, %68 : vector<32x64xf32>
    %70 = arith.addf %63, %69 : vector<32x64xf32>
    %c0_15 = arith.constant 0 : index
    %c0_16 = arith.constant 0 : index
    %71 = vector.load %arg6[%c0_15, %c0_16] : memref<1x64xf32, #tpu.memory_space<vmem>>, vector<1x64xf32>
    %72 = vector.broadcast %71 : vector<1x64xf32> to vector<32x64xf32>
    %73 = arith.addf %70, %72 : vector<32x64xf32>
    %cst = arith.constant dense<0.000000e+00> : vector<32xf32>
    %74 = vector.multi_reduction <add>, %73, %cst [1] : vector<32x64xf32> to vector<32xf32>
    %75 = vector.shape_cast %74 : vector<32xf32> to vector<32x1xf32>
    %cst_17 = arith.constant 6.400000e+01 : f32
    %76 = vector.broadcast %cst_17 : f32 to vector<32x1xf32>
    %77 = arith.divf %75, %76 : vector<32x1xf32>
    %78 = vector.broadcast %77 : vector<32x1xf32> to vector<32x64xf32>
    %79 = arith.subf %73, %78 : vector<32x64xf32>
    %80 = arith.mulf %79, %79 : vector<32x64xf32>
    %cst_18 = arith.constant dense<0.000000e+00> : vector<32xf32>
    %81 = vector.multi_reduction <add>, %80, %cst_18 [1] : vector<32x64xf32> to vector<32xf32>
    %82 = vector.shape_cast %81 : vector<32xf32> to vector<32x1xf32>
    %cst_19 = arith.constant 6.400000e+01 : f32
    %83 = vector.broadcast %cst_19 : f32 to vector<32x1xf32>
    %84 = arith.divf %82, %83 : vector<32x1xf32>
    %cst_20 = arith.constant 9.99999997E-7 : f32
    %85 = vector.broadcast %cst_20 : f32 to vector<32x1xf32>
    %86 = arith.addf %84, %85 : vector<32x1xf32>
    %87 = math.rsqrt %86 : vector<32x1xf32>
    %88 = vector.broadcast %87 : vector<32x1xf32> to vector<32x64xf32>
    %89 = arith.mulf %79, %88 : vector<32x64xf32>
    %c0_21 = arith.constant 0 : index
    %c0_22 = arith.constant 0 : index
    %90 = vector.load %arg7[%c0_21, %c0_22] : memref<1x64xf32, #tpu.memory_space<vmem>>, vector<1x64xf32>
    %91 = vector.broadcast %90 : vector<1x64xf32> to vector<32x64xf32>
    %92 = arith.mulf %89, %91 : vector<32x64xf32>
    %c0_23 = arith.constant 0 : index
    %c0_24 = arith.constant 0 : index
    %93 = vector.load %arg8[%c0_23, %c0_24] : memref<1x64xf32, #tpu.memory_space<vmem>>, vector<1x64xf32>
    %94 = vector.broadcast %93 : vector<1x64xf32> to vector<32x64xf32>
    %95 = arith.addf %92, %94 : vector<32x64xf32>
    %96 = arith.truncf %95 : vector<32x64xf32> to vector<32x64xbf16>
    %c0_25 = arith.constant 0 : index
    %c0_26 = arith.constant 0 : index
    %97 = vector.load %arg9[%c0_25, %c0_26] : memref<64x128xbf16, #tpu.memory_space<vmem>>, vector<64x128xbf16>
    %cst_27 = arith.constant dense<0.000000e+00> : vector<32x128xf32>
    %98 = tpu.matmul %96, %97, %cst_27 {dimension_numbers = #tpu.dot_dimension_numbers<[1], [0], [0], [1], [0, 0, 1, 1], [], []>} : vector<32x64xbf16>, vector<64x128xbf16>, vector<32x128xf32> -> vector<32x128xf32>
    %c0_28 = arith.constant 0 : index
    %c0_29 = arith.constant 0 : index
    %99 = vector.load %arg10[%c0_28, %c0_29] : memref<1x128xf32, #tpu.memory_space<vmem>>, vector<1x128xf32>
    %100 = vector.broadcast %99 : vector<1x128xf32> to vector<32x128xf32>
    %101 = arith.addf %98, %100 : vector<32x128xf32>
    %cst_30 = arith.constant 5.000000e-01 : f32
    %102 = vector.broadcast %cst_30 : f32 to vector<32x128xf32>
    %103 = arith.mulf %102, %101 : vector<32x128xf32>
    %cst_31 = arith.constant 0.707106769 : f32
    %104 = vector.broadcast %cst_31 : f32 to vector<32x128xf32>
    %105 = arith.mulf %101, %104 : vector<32x128xf32>
    %106 = math.erf %105 : vector<32x128xf32>
    %cst_32 = arith.constant 1.000000e+00 : f32
    %107 = vector.broadcast %cst_32 : f32 to vector<32x128xf32>
    %108 = arith.addf %107, %106 : vector<32x128xf32>
    %109 = arith.mulf %103, %108 : vector<32x128xf32>
    %110 = arith.truncf %109 : vector<32x128xf32> to vector<32x128xbf16>
    %c0_33 = arith.constant 0 : index
    %c0_34 = arith.constant 0 : index
    %111 = vector.load %arg11[%c0_33, %c0_34] : memref<128x64xbf16, #tpu.memory_space<vmem>>, vector<128x64xbf16>
    %cst_35 = arith.constant dense<0.000000e+00> : vector<32x64xf32>
    %112 = tpu.matmul %110, %111, %cst_35 {dimension_numbers = #tpu.dot_dimension_numbers<[1], [0], [0], [1], [0, 0, 1, 1], [], []>} : vector<32x128xbf16>, vector<128x64xbf16>, vector<32x64xf32> -> vector<32x64xf32>
    %c0_36 = arith.constant 0 : index
    %c0_37 = arith.constant 0 : index
    %113 = vector.load %arg12[%c0_36, %c0_37] : memref<1x64xf32, #tpu.memory_space<vmem>>, vector<1x64xf32>
    %114 = vector.broadcast %113 : vector<1x64xf32> to vector<32x64xf32>
    %115 = arith.addf %112, %114 : vector<32x64xf32>
    %c0_38 = arith.constant 0 : index
    %c0_39 = arith.constant 0 : index
    %116 = vector.load %arg13[%c0_38, %c0_39] : memref<1x64xf32, #tpu.memory_space<vmem>>, vector<1x64xf32>
    %117 = vector.broadcast %116 : vector<1x64xf32> to vector<32x64xf32>
    %118 = arith.mulf %115, %117 : vector<32x64xf32>
    %119 = arith.addf %1, %118 : vector<32x64xf32>
    %c0_40 = arith.constant 0 : index
    %c0_41 = arith.constant 0 : index
    %c0_42 = arith.constant 0 : index
    %120 = vector.load %arg14[%c0_40, %c0_41, %c0_42] : memref<1x32x64xf32, #tpu.memory_space<vmem>>, vector<1x32x64xf32>
    %121 = vector.shape_cast %120 : vector<1x32x64xf32> to vector<32x64xf32>
    %122 = vector.shape_cast %119 : vector<32x64xf32> to vector<1x32x64xf32>
    tpu.vector_store %arg14[%c0_40, %c0_41, %c0_42], %122 {strides = array<i32>} : memref<1x32x64xf32, #tpu.memory_space<vmem>>, vector<1x32x64xf32>,
    return
  }
  func.func @transform_0(%arg0: i32, %arg1: i32) -> (i32, i32, i32) {
    %c0_i32 = arith.constant 0 : i32
    %c0_i32_0 = arith.constant 0 : i32
    return %arg0, %arg1, %c0_i32 : i32, i32, i32
  }
  func.func @transform_1(%arg0: i32, %arg1: i32) -> (i32, i32, i32) {
    %c4_i32 = arith.constant 4 : i32
    %0 = arith.muli %arg1, %c4_i32 : i32
    %c1_i32 = arith.constant 1 : i32
    %1 = arith.subi %0, %c1_i32 : i32
    %c0_i32 = arith.constant 0 : i32
    %2 = arith.maxsi %1, %c0_i32 : i32
    %c0_i32_0 = arith.constant 0 : i32
    %c0_i32_1 = arith.constant 0 : i32
    return %arg0, %2, %c0_i32_0 : i32, i32, i32
  }
  func.func @transform_2(%arg0: i32, %arg1: i32) -> (i32, i32, i32) {
    %c1_i32 = arith.constant 1 : i32
    %0 = arith.addi %arg1, %c1_i32 : i32
    %c4_i32 = arith.constant 4 : i32
    %1 = arith.muli %0, %c4_i32 : i32
    %c11_i32 = arith.constant 11 : i32
    %2 = arith.minsi %1, %c11_i32 : i32
    %c0_i32 = arith.constant 0 : i32
    %c0_i32_0 = arith.constant 0 : i32
    return %arg0, %2, %c0_i32 : i32, i32, i32
  }
  func.func @transform_3(%arg0: i32, %arg1: i32) -> (i32, i32) {
    %c0_i32 = arith.constant 0 : i32
    %c0_i32_0 = arith.constant 0 : i32
    %c0_i32_1 = arith.constant 0 : i32
    return %c0_i32, %c0_i32_0 : i32, i32
  }
  func.func @transform_4(%arg0: i32, %arg1: i32) -> (i32, i32) {
    %c0_i32 = arith.constant 0 : i32
    %c0_i32_0 = arith.constant 0 : i32
    %c0_i32_1 = arith.constant 0 : i32
    return %c0_i32, %c0_i32_0 : i32, i32
  }
  func.func @transform_5(%arg0: i32, %arg1: i32) -> (i32, i32) {
    %c0_i32 = arith.constant 0 : i32
    %c0_i32_0 = arith.constant 0 : i32
    %c0_i32_1 = arith.constant 0 : i32
    return %c0_i32, %c0_i32_0 : i32, i32
  }
  func.func @transform_6(%arg0: i32, %arg1: i32) -> (i32, i32) {
    %c0_i32 = arith.constant 0 : i32
    %c0_i32_0 = arith.constant 0 : i32
    %c0_i32_1 = arith.constant 0 : i32
    return %c0_i32, %c0_i32_0 : i32, i32
  }
  func.func @transform_7(%arg0: i32, %arg1: i32) -> (i32, i32) {
    %c0_i32 = arith.constant 0 : i32
    %c0_i32_0 = arith.constant 0 : i32
    %c0_i32_1 = arith.constant 0 : i32
    return %c0_i32, %c0_i32_0 : i32, i32
  }
  func.func @transform_8(%arg0: i32, %arg1: i32) -> (i32, i32) {
    %c0_i32 = arith.constant 0 : i32
    %c0_i32_0 = arith.constant 0 : i32
    %c0_i32_1 = arith.constant 0 : i32
    return %c0_i32, %c0_i32_0 : i32, i32
  }
  func.func @transform_9(%arg0: i32, %arg1: i32) -> (i32, i32) {
    %c0_i32 = arith.constant 0 : i32
    %c0_i32_0 = arith.constant 0 : i32
    %c0_i32_1 = arith.constant 0 : i32
    return %c0_i32, %c0_i32_0 : i32, i32
  }
  func.func @transform_10(%arg0: i32, %arg1: i32) -> (i32, i32) {
    %c0_i32 = arith.constant 0 : i32
    %c0_i32_0 = arith.constant 0 : i32
    %c0_i32_1 = arith.constant 0 : i32
    return %c0_i32, %c0_i32_0 : i32, i32
  }
  func.func @transform_11(%arg0: i32, %arg1: i32) -> (i32, i32) {
    %c0_i32 = arith.constant 0 : i32
    %c0_i32_0 = arith.constant 0 : i32
    %c0_i32_1 = arith.constant 0 : i32
    return %c0_i32, %c0_i32_0 : i32, i32
  }
  func.func @transform_12(%arg0: i32, %arg1: i32) -> (i32, i32, i32) {
    %c0_i32 = arith.constant 0 : i32
    %c0_i32_0 = arith.constant 0 : i32
    return %arg0, %arg1, %c0_i32 : i32, i32, i32
  }
}

</mosaic_0001>

<llo_original>
// kernel: convnext_block.1
$region0: #{convnext_block.1}
  #allocation0 [shape = 'u32[]', space=smem, size = 0x4, offset = 0x4, fixed_abs, tag = 'smem constant byte address 0x4 - core index']
  #allocation1 [shape = 'u32[144,128]{1,0:T(1,128)}', space=vmem, size = 0x12000, scoped, tag = 'internal scratch']
  #allocation2 [shape = 'f32[48,64]{1,0:T(8,128)}', space=vmem, size = 0x6000, scoped, tag = 'scratch operand']
  %s0 = inlined_call_operand.vmem [shape: f32[2,96,64], index: 0, kind: input, shape index: {}, may-alias: {0,1,2}]
  %s1 = inlined_call_operand.vmem [shape: f32[2,96,64], index: 1, kind: input, shape index: {}, may-alias: {0,1,2}]
  %s2 = inlined_call_operand.vmem [shape: f32[2,96,64], index: 2, kind: input, shape index: {}, may-alias: {0,1,2}]
  %s3 = inlined_call_operand.vmem [shape: f32[7,64], index: 3, kind: input, shape index: {}]
  %s4 = inlined_call_operand.vmem [shape: f32[1,64], index: 4, kind: input, shape index: {}]
  %s5 = inlined_call_operand.vmem [shape: f32[1,64], index: 5, kind: input, shape index: {}]
  %s6 = inlined_call_operand.vmem [shape: f32[1,64], index: 6, kind: input, shape index: {}]
  %s7 = inlined_call_operand.vmem [shape: bf16[64,128], index: 7, kind: input, shape index: {}]
  %s8 = inlined_call_operand.vmem [shape: f32[1,128], index: 8, kind: input, shape index: {}]
  %s9 = inlined_call_operand.vmem [shape: bf16[128,64], index: 9, kind: input, shape index: {}]
  %s10 = inlined_call_operand.vmem [shape: f32[1,64], index: 10, kind: input, shape index: {}]
  %s11 = inlined_call_operand.vmem [shape: f32[1,64], index: 11, kind: input, shape index: {}]
  %s12 = inlined_call_operand.vmem [shape: f32[2,96,64], index: 12, kind: output, shape index: {}]
  %s13 = sld [smem:[#allocation0]]
  $region81: #{convnext_block.1} parent=0
    _
  %s15 = ssub.s32 1, %s13
  %s16 = scalar_select 0, %s15, %s13
  loop: start=0, step=1, limit=8
  $region2: #{convnext_block.1} parent=0 // loop_pre_header
    _
  $region3: #{convnext_block.1} parent=0 // loop_header
    %s18 = sphi 0, %s22
    %p19 = scmp.ge.s32.totalorder %s18, 8
    %s25 = sphi 0, %s37
    %s26 = sphi 0, %s33
    %s27 = sphi 0, %s25
    %s28 = sphi 0, %s26
    %s29 = sphi 0, %s27
    %s30 = sphi 0, %s28
    %s42 = sphi 0, %s44
    %s45 = sphi 0, %s42
    %s46 = sphi 0, %s45
    %s62 = sphi 0, %s46
    %s78 = sphi 0, %s80
    %s81 = sphi 0, %s78
    %s82 = sphi 0, %s81
    %s98 = sphi 0, %s82
    %s114 = sphi 0, %s116
    %s117 = sphi 0, %s114
    %s118 = sphi 0, %s117
    %s134 = sphi 0, %s118
    %s138 = sphi 0, %s138
    %s140 = sphi 0, %s138
    %s141 = sphi 0, %s140
    %s155 = sphi 0, %s141
    %s159 = sphi 0, %s159
    %s161 = sphi 0, %s159
    %s162 = sphi 0, %s161
    %s176 = sphi 0, %s162
    %s180 = sphi 0, %s180
    %s182 = sphi 0, %s180
    %s183 = sphi 0, %s182
    %s197 = sphi 0, %s183
    %s201 = sphi 0, %s201
    %s203 = sphi 0, %s201
    %s204 = sphi 0, %s203
    %s218 = sphi 0, %s204
    %s222 = sphi 0, %s222
    %s224 = sphi 0, %s222
    %s225 = sphi 0, %s224
    %s239 = sphi 0, %s225
    %s243 = sphi 0, %s243
    %s245 = sphi 0, %s243
    %s246 = sphi 0, %s245
    %s260 = sphi 0, %s246
    %s264 = sphi 0, %s264
    %s266 = sphi 0, %s264
    %s267 = sphi 0, %s266
    %s281 = sphi 0, %s267
    %s285 = sphi 0, %s285
    %s287 = sphi 0, %s285
    %s288 = sphi 0, %s287
    %s302 = sphi 0, %s288
    %s306 = sphi 0, %s306
    %s308 = sphi 0, %s306
    %s309 = sphi 0, %s308
    %s323 = sphi 0, %s309
    %s331 = sphi 0, %s333
    %s334 = sphi 0, %s331
    %s335 = sphi 0, %s334
    %s351 = sphi 0, %s335
  $region4: #{convnext_block.1} parent=0 // loop_header_branch
    %21 = sbr.rel (%p19) target = $region8
  $region5: #{convnext_block.1} parent=0 // loop_body
    %s23 = ssub.s32 %s18, 1
    %s24 = ssub.s32 %s18, 2
    %s31 = sadd.s32 1, %s26
    %p32 = scmp.ge.s32.totalorder %s31, 3
    %s33 = scalar_select %p32, 0, %s31
    %s34 = sadd.s32 1, %s25
    %s35 = scalar_select %p32, %s34, %s25
    %p36 = scmp.ge.s32.totalorder %s35, 2
    %s37 = scalar_select %p36, 0, %s35
    %s38 = ssub.s32 %s25, %s37
    %s39 = ssub.s32 %s26, %s33
    %s40 = sor.u32 %s38, %s39
    %p41 = scmp.eq.s32.totalorder %s40, 0
    %s43 = sadd.s32 %s42, 1
    %s44 = scalar_select %p41, %s42, %s43
    %p47 = pneg %p41
    %p48 = scmp.eq.s32.totalorder %s18, 5
    %p49 = por %p47, %p48
    %p50 = scmp.ne.s32.totalorder %s42, %s45
    %p51 = scmp.eq.s32.totalorder %s18, 0
    %p52 = por %p50, %p51
    %p53 = scmp.ne.s32.totalorder %s42, %s45
    %p54 = scmp.eq.s32.totalorder %s23, 5
    %p55 = por %p53, %p54
    %p56 = scmp.ne.s32.totalorder %s45, %s46
    %p57 = scmp.eq.s32.totalorder %s23, 0
    %p58 = por %p56, %p57
    %p59 = scmp.ne.s32.totalorder %s45, %s46
    %p60 = scmp.eq.s32.totalorder %s24, 5
    %p61 = por %p59, %p60
    %p63 = scmp.ne.s32.totalorder %s46, %s62
    %p64 = scmp.eq.s32.totalorder %s24, 0
    %p65 = por %p63, %p64
    %s66 = smul.u32 %s26, 4
    %s67 = ssub.s32 %s66, 1
    %p68 = scmp.gt.s32.totalorder %s67, 0
    %s69 = scalar_select %p68, %s67, 0
    %s70 = smul.u32 %s33, 4
    %s71 = ssub.s32 %s70, 1
    %p72 = scmp.gt.s32.totalorder %s71, 0
    %s73 = scalar_select %p72, %s71, 0
    %s74 = ssub.s32 %s25, %s37
    %s75 = ssub.s32 %s69, %s73
    %s76 = sor.u32 %s74, %s75
    %p77 = scmp.eq.s32.totalorder %s76, 0
    %s79 = sadd.s32 %s78, 1
    %s80 = scalar_select %p77, %s78, %s79
    %p83 = pneg %p77
    %p84 = scmp.eq.s32.totalorder %s18, 5
    %p85 = por %p83, %p84
    %p86 = scmp.ne.s32.totalorder %s78, %s81
    %p87 = scmp.eq.s32.totalorder %s18, 0
    %p88 = por %p86, %p87
    %p89 = scmp.ne.s32.totalorder %s78, %s81
    %p90 = scmp.eq.s32.totalorder %s23, 5
    %p91 = por %p89, %p90
    %p92 = scmp.ne.s32.totalorder %s81, %s82
    %p93 = scmp.eq.s32.totalorder %s23, 0
    %p94 = por %p92, %p93
    %p95 = scmp.ne.s32.totalorder %s81, %s82
    %p96 = scmp.eq.s32.totalorder %s24, 5
    %p97 = por %p95, %p96
    %p99 = scmp.ne.s32.totalorder %s82, %s98
    %p100 = scmp.eq.s32.totalorder %s24, 0
    %p101 = por %p99, %p100
    %s102 = sadd.s32 %s26, 1
    %s103 = smul.u32 %s102, 4
    %p104 = scmp.lt.s32.totalorder %s103, 11
    %s105 = scalar_select %p104, %s103, 11
    %s106 = sadd.s32 %s33, 1
    %s107 = smul.u32 %s106, 4
    %p108 = scmp.lt.s32.totalorder %s107, 11
    %s109 = scalar_select %p108, %s107, 11
    %s110 = ssub.s32 %s25, %s37
    %s111 = ssub.s32 %s105, %s109
    %s112 = sor.u32 %s110, %s111
    %p113 = scmp.eq.s32.totalorder %s112, 0
    %s115 = sadd.s32 %s114, 1
    %s116 = scalar_select %p113, %s114, %s115
    %p119 = pneg %p113
    %p120 = scmp.eq.s32.totalorder %s18, 5
    %p121 = por %p119, %p120
    %p122 = scmp.ne.s32.totalorder %s114, %s117
    %p123 = scmp.eq.s32.totalorder %s18, 0
    %p124 = por %p122, %p123
    %p125 = scmp.ne.s32.totalorder %s114, %s117
    %p126 = scmp.eq.s32.totalorder %s23, 5
    %p127 = por %p125, %p126
    %p128 = scmp.ne.s32.totalorder %s117, %s118
    %p129 = scmp.eq.s32.totalorder %s23, 0
    %p130 = por %p128, %p129
    %p131 = scmp.ne.s32.totalorder %s117, %s118
    %p132 = scmp.eq.s32.totalorder %s24, 5
    %p133 = por %p131, %p132
    %p135 = scmp.ne.s32.totalorder %s118, %s134
    %p136 = scmp.eq.s32.totalorder %s24, 0
    %p137 = por %p135, %p136
    %s139 = sadd.s32 %s138, 1
    %p142 = scmp.eq.s32.totalorder %s18, 5
    %p143 = scmp.ne.s32.totalorder %s138, %s140
    %p144 = scmp.eq.s32.totalorder %s18, 0
    %p145 = por %p143, %p144
    %p146 = scmp.ne.s32.totalorder %s138, %s140
    %p147 = scmp.eq.s32.totalorder %s23, 5
    %p148 = por %p146, %p147
    %p149 = scmp.ne.s32.totalorder %s140, %s141
    %p150 = scmp.eq.s32.totalorder %s23, 0
    %p151 = por %p149, %p150
    %p152 = scmp.ne.s32.totalorder %s140, %s141
    %p153 = scmp.eq.s32.totalorder %s24, 5
    %p154 = por %p152, %p153
    %p156 = scmp.ne.s32.totalorder %s141, %s155
    %p157 = scmp.eq.s32.totalorder %s24, 0
    %p158 = por %p156, %p157
    %s160 = sadd.s32 %s159, 1
    %p163 = scmp.eq.s32.totalorder %s18, 5
    %p164 = scmp.ne.s32.totalorder %s159, %s161
    %p165 = scmp.eq.s32.totalorder %s18, 0
    %p166 = por %p164, %p165
    %p167 = scmp.ne.s32.totalorder %s159, %s161
    %p168 = scmp.eq.s32.totalorder %s23, 5
    %p169 = por %p167, %p168
    %p170 = scmp.ne.s32.totalorder %s161, %s162
    %p171 = scmp.eq.s32.totalorder %s23, 0
    %p172 = por %p170, %p171
    %p173 = scmp.ne.s32.totalorder %s161, %s162
    %p174 = scmp.eq.s32.totalorder %s24, 5
    %p175 = por %p173, %p174
    %p177 = scmp.ne.s32.totalorder %s162, %s176
    %p178 = scmp.eq.s32.totalorder %s24, 0
    %p179 = por %p177, %p178
    %s181 = sadd.s32 %s180, 1
    %p184 = scmp.eq.s32.totalorder %s18, 5
    %p185 = scmp.ne.s32.totalorder %s180, %s182
    %p186 = scmp.eq.s32.totalorder %s18, 0
    %p187 = por %p185, %p186
    %p188 = scmp.ne.s32.totalorder %s180, %s182
    %p189 = scmp.eq.s32.totalorder %s23, 5
    %p190 = por %p188, %p189
    %p191 = scmp.ne.s32.totalorder %s182, %s183
    %p192 = scmp.eq.s32.totalorder %s23, 0
    %p193 = por %p191, %p192
    %p194 = scmp.ne.s32.totalorder %s182, %s183
    %p195 = scmp.eq.s32.totalorder %s24, 5
    %p196 = por %p194, %p195
    %p198 = scmp.ne.s32.totalorder %s183, %s197
    %p199 = scmp.eq.s32.totalorder %s24, 0
    %p200 = por %p198, %p199
    %s202 = sadd.s32 %s201, 1
    %p205 = scmp.eq.s32.totalorder %s18, 5
    %p206 = scmp.ne.s32.totalorder %s201, %s203
    %p207 = scmp.eq.s32.totalorder %s18, 0
    %p208 = por %p206, %p207
    %p209 = scmp.ne.s32.totalorder %s201, %s203
    %p210 = scmp.eq.s32.totalorder %s23, 5
    %p211 = por %p209, %p210
    %p212 = scmp.ne.s32.totalorder %s203, %s204
    %p213 = scmp.eq.s32.totalorder %s23, 0
    %p214 = por %p212, %p213
    %p215 = scmp.ne.s32.totalorder %s203, %s204
    %p216 = scmp.eq.s32.totalorder %s24, 5
    %p217 = por %p215, %p216
    %p219 = scmp.ne.s32.totalorder %s204, %s218
    %p220 = scmp.eq.s32.totalorder %s24, 0
    %p221 = por %p219, %p220
    %s223 = sadd.s32 %s222, 1
    %p226 = scmp.eq.s32.totalorder %s18, 5
    %p227 = scmp.ne.s32.totalorder %s222, %s224
    %p228 = scmp.eq.s32.totalorder %s18, 0
    %p229 = por %p227, %p228
    %p230 = scmp.ne.s32.totalorder %s222, %s224
    %p231 = scmp.eq.s32.totalorder %s23, 5
    %p232 = por %p230, %p231
    %p233 = scmp.ne.s32.totalorder %s224, %s225
    %p234 = scmp.eq.s32.totalorder %s23, 0
    %p235 = por %p233, %p234
    %p236 = scmp.ne.s32.totalorder %s224, %s225
    %p237 = scmp.eq.s32.totalorder %s24, 5
    %p238 = por %p236, %p237
    %p240 = scmp.ne.s32.totalorder %s225, %s239
    %p241 = scmp.eq.s32.totalorder %s24, 0
    %p242 = por %p240, %p241
    %s244 = sadd.s32 %s243, 1
    %p247 = scmp.eq.s32.totalorder %s18, 5
    %p248 = scmp.ne.s32.totalorder %s243, %s245
    %p249 = scmp.eq.s32.totalorder %s18, 0
    %p250 = por %p248, %p249
    %p251 = scmp.ne.s32.totalorder %s243, %s245
    %p252 = scmp.eq.s32.totalorder %s23, 5
    %p253 = por %p251, %p252
    %p254 = scmp.ne.s32.totalorder %s245, %s246
    %p255 = scmp.eq.s32.totalorder %s23, 0
    %p256 = por %p254, %p255
    %p257 = scmp.ne.s32.totalorder %s245, %s246
    %p258 = scmp.eq.s32.totalorder %s24, 5
    %p259 = por %p257, %p258
    %p261 = scmp.ne.s32.totalorder %s246, %s260
    %p262 = scmp.eq.s32.totalorder %s24, 0
    %p263 = por %p261, %p262
    %s265 = sadd.s32 %s264, 1
    %p268 = scmp.eq.s32.totalorder %s18, 5
    %p269 = scmp.ne.s32.totalorder %s264, %s266
    %p270 = scmp.eq.s32.totalorder %s18, 0
    %p271 = por %p269, %p270
    %p272 = scmp.ne.s32.totalorder %s264, %s266
    %p273 = scmp.eq.s32.totalorder %s23, 5
    %p274 = por %p272, %p273
    %p275 = scmp.ne.s32.totalorder %s266, %s267
    %p276 = scmp.eq.s32.totalorder %s23, 0
    %p277 = por %p275, %p276
    %p278 = scmp.ne.s32.totalorder %s266, %s267
    %p279 = scmp.eq.s32.totalorder %s24, 5
    %p280 = por %p278, %p279
    %p282 = scmp.ne.s32.totalorder %s267, %s281
    %p283 = scmp.eq.s32.totalorder %s24, 0
    %p284 = por %p282, %p283
    %s286 = sadd.s32 %s285, 1
    %p289 = scmp.eq.s32.totalorder %s18, 5
    %p290 = scmp.ne.s32.totalorder %s285, %s287
    %p291 = scmp.eq.s32.totalorder %s18, 0
    %p292 = por %p290, %p291
    %p293 = scmp.ne.s32.totalorder %s285, %s287
    %p294 = scmp.eq.s32.totalorder %s23, 5
    %p295 = por %p293, %p294
    %p296 = scmp.ne.s32.totalorder %s287, %s288
    %p297 = scmp.eq.s32.totalorder %s23, 0
    %p298 = por %p296, %p297
    %p299 = scmp.ne.s32.totalorder %s287, %s288
    %p300 = scmp.eq.s32.totalorder %s24, 5
    %p301 = por %p299, %p300
    %p303 = scmp.ne.s32.totalorder %s288, %s302
    %p304 = scmp.eq.s32.totalorder %s24, 0
    %p305 = por %p303, %p304
    %s307 = sadd.s32 %s306, 1
    %p310 = scmp.eq.s32.totalorder %s18, 5
    %p311 = scmp.ne.s32.totalorder %s306, %s308
    %p312 = scmp.eq.s32.totalorder %s18, 0
    %p313 = por %p311, %p312
    %p314 = scmp.ne.s32.totalorder %s306, %s308
    %p315 = scmp.eq.s32.totalorder %s23, 5
    %p316 = por %p314, %p315
    %p317 = scmp.ne.s32.totalorder %s308, %s309
    %p318 = scmp.eq.s32.totalorder %s23, 0
    %p319 = por %p317, %p318
    %p320 = scmp.ne.s32.totalorder %s308, %s309
    %p321 = scmp.eq.s32.totalorder %s24, 5
    %p322 = por %p320, %p321
    %p324 = scmp.ne.s32.totalorder %s309, %s323
    %p325 = scmp.eq.s32.totalorder %s24, 0
    %p326 = por %p324, %p325
    %s327 = ssub.s32 %s25, %s37
    %s328 = ssub.s32 %s26, %s33
    %s329 = sor.u32 %s327, %s328
    %p330 = scmp.eq.s32.totalorder %s329, 0
    %s332 = sadd.s32 %s331, 1
    %s333 = scalar_select %p330, %s331, %s332
    %p336 = pneg %p330
    %p337 = scmp.eq.s32.totalorder %s18, 5
    %p338 = por %p336, %p337
    %p339 = scmp.ne.s32.totalorder %s331, %s334
    %p340 = scmp.eq.s32.totalorder %s18, 0
    %p341 = por %p339, %p340
    %p342 = scmp.ne.s32.totalorder %s331, %s334
    %p343 = scmp.eq.s32.totalorder %s23, 5
    %p344 = por %p342, %p343
    %p345 = scmp.ne.s32.totalorder %s334, %s335
    %p346 = scmp.eq.s32.totalorder %s23, 0
    %p347 = por %p345, %p346
    %p348 = scmp.ne.s32.totalorder %s334, %s335
    %p349 = scmp.eq.s32.totalorder %s24, 5
    %p350 = por %p348, %p349
    %p352 = scmp.ne.s32.totalorder %s335, %s351
    %p353 = scmp.eq.s32.totalorder %s24, 0
    %p354 = por %p352, %p353
    %p355 = scmp.le.s32.totalorder 1, %s18
    %p356 = scmp.lt.s32.totalorder %s18, 7
    %p357 = pnand %p355, %p356
    %p358 = pneg %p357
    // Predicated region
    $region9: #{convnext_block.1} parent=5 // pred_check
      _
    $region10: #{convnext_block.1} parent=5 // pred_check_branch
      %360 = sbr.rel (%p357) target = $region12
    $region11: #{convnext_block.1} parent=5 // pred_region
      %s361 = ssub.s32 %s18, 1
      // Predicated region
      $region13: #{convnext_block.1} parent=11 // pred_check
        %p362 = pneg %p151
      $region14: #{convnext_block.1} parent=11 // pred_check_branch
        %364 = sbr.rel (%p362) target = $region16
      $region15: #{convnext_block.1} parent=11 // pred_region
        _
      $region16: #{convnext_block.1} parent=11 // pred_fallthru
        _
      // Predicated region
      $region17: #{convnext_block.1} parent=11 // pred_check
        %p365 = pneg %p172
      $region18: #{convnext_block.1} parent=11 // pred_check_branch
        %367 = sbr.rel (%p365) target = $region20
      $region19: #{convnext_block.1} parent=11 // pred_region
        _
      $region20: #{convnext_block.1} parent=11 // pred_fallthru
        _
      // Predicated region
      $region21: #{convnext_block.1} parent=11 // pred_check
        %p368 = pneg %p193
      $region22: #{convnext_block.1} parent=11 // pred_check_branch
        %370 = sbr.rel (%p368) target = $region24
      $region23: #{convnext_block.1} parent=11 // pred_region
        _
      $region24: #{convnext_block.1} parent=11 // pred_fallthru
        _
      // Predicated region
      $region25: #{convnext_block.1} parent=11 // pred_check
        %p371 = pneg %p214
      $region26: #{convnext_block.1} parent=11 // pred_check_branch
        %373 = sbr.rel (%p371) target = $region28
      $region27: #{convnext_block.1} parent=11 // pred_region
        _
      $region28: #{convnext_block.1} parent=11 // pred_fallthru
        _
      // Predicated region
      $region29: #{convnext_block.1} parent=11 // pred_check
        %p374 = pneg %p235
      $region30: #{convnext_block.1} parent=11 // pred_check_branch
        %376 = sbr.rel (%p374) target = $region32
      $region31: #{convnext_block.1} parent=11 // pred_region
        _
      $region32: #{convnext_block.1} parent=11 // pred_fallthru
        _
      // Predicated region
      $region33: #{convnext_block.1} parent=11 // pred_check
        %p377 = pneg %p256
      $region34: #{convnext_block.1} parent=11 // pred_check_branch
        %379 = sbr.rel (%p377) target = $region36
      $region35: #{convnext_block.1} parent=11 // pred_region
        _
      $region36: #{convnext_block.1} parent=11 // pred_fallthru
        _
      // Predicated region
      $region37: #{convnext_block.1} parent=11 // pred_check
        %p380 = pneg %p277
      $region38: #{convnext_block.1} parent=11 // pred_check_branch
        %382 = sbr.rel (%p380) target = $region40
      $region39: #{convnext_block.1} parent=11 // pred_region
        _
      $region40: #{convnext_block.1} parent=11 // pred_fallthru
        _
      // Predicated region
      $region41: #{convnext_block.1} parent=11 // pred_check
        %p383 = pneg %p298
      $region42: #{convnext_block.1} parent=11 // pred_check_branch
        %385 = sbr.rel (%p383) target = $region44
      $region43: #{convnext_block.1} parent=11 // pred_region
        _
      $region44: #{convnext_block.1} parent=11 // pred_fallthru
        _
      // Predicated region
      $region45: #{convnext_block.1} parent=11 // pred_check
        %p386 = pneg %p319
      $region46: #{convnext_block.1} parent=11 // pred_check_branch
        %388 = sbr.rel (%p386) target = $region48
      $region47: #{convnext_block.1} parent=11 // pred_region
        _
      $region48: #{convnext_block.1} parent=11 // pred_fallthru
        _
    $region12: #{convnext_block.1} parent=5 // pred_fallthru
      _
    %p389 = scmp.lt.s32.totalorder %s18, 6
    // Predicated region
    $region49: #{convnext_block.1} parent=5 // pred_check
      %p390 = pneg %p389
    $region50: #{convnext_block.1} parent=5 // pred_check_branch
      %392 = sbr.rel (%p390) target = $region52
    $region51: #{convnext_block.1} parent=5 // pred_region
      // Predicated region
      $region53: #{convnext_block.1} parent=51 // pred_check
        %p393 = pneg %p52
      $region54: #{convnext_block.1} parent=51 // pred_check_branch
        %395 = sbr.rel (%p393) target = $region56
      $region55: #{convnext_block.1} parent=51 // pred_region
        %s396 = smul.u32 4, %s26
        %p397 = scmp.lt.s32.totalorder %s25, 1
        %s398 = scalar_select %p397, %s25, 1
        %p399 = scmp.lt.s32.totalorder %s396, 11
        %s400 = scalar_select %p399, %s396, 11
        %s401 = smul.addr %s398, 12
        %s402 = sadd.s32 %s400, %s401
        %s403 = smul.addr %s402, 8
        %s404 = scalar_lea.vmem %s0, %s403
        %s405 = smul.u32 4, %s26
      $region56: #{convnext_block.1} parent=51 // pred_fallthru
        _
      // Predicated region
      $region57: #{convnext_block.1} parent=51 // pred_check
        %p406 = pneg %p88
      $region58: #{convnext_block.1} parent=51 // pred_check_branch
        %408 = sbr.rel (%p406) target = $region60
      $region59: #{convnext_block.1} parent=51 // pred_region
        %s409 = smul.u32 %s26, 4
        %s410 = ssub.s32 %s409, 1
        %p411 = scmp.gt.s32.totalorder %s410, 0
        %s412 = scalar_select %p411, %s410, 0
        %p413 = scmp.lt.s32.totalorder %s25, 1
        %s414 = scalar_select %p413, %s25, 1
        %p415 = scmp.lt.s32.totalorder %s412, 11
        %s416 = scalar_select %p415, %s412, 11
        %s417 = smul.addr %s414, 12
        %s418 = sadd.s32 %s416, %s417
        %s419 = smul.addr %s418, 8
        %s420 = scalar_lea.vmem %s1, %s419
        %s421 = smul.u32 %s26, 4
        %s422 = ssub.s32 %s421, 1
        %p423 = scmp.gt.s32.totalorder %s422, 0
        %s424 = scalar_select %p423, %s422, 0
      $region60: #{convnext_block.1} parent=51 // pred_fallthru
        _
      // Predicated region
      $region61: #{convnext_block.1} parent=51 // pred_check
        %p425 = pneg %p124
      $region62: #{convnext_block.1} parent=51 // pred_check_branch
        %427 = sbr.rel (%p425) target = $region64
      $region63: #{convnext_block.1} parent=51 // pred_region
        %s428 = sadd.s32 %s26, 1
        %s429 = smul.u32 %s428, 4
        %p430 = scmp.lt.s32.totalorder %s429, 11
        %s431 = scalar_select %p430, %s429, 11
        %p432 = scmp.lt.s32.totalorder %s25, 1
        %s433 = scalar_select %p432, %s25, 1
        %p434 = scmp.lt.s32.totalorder %s431, 11
        %s435 = scalar_select %p434, %s431, 11
        %s436 = smul.addr %s433, 12
        %s437 = sadd.s32 %s435, %s436
        %s438 = smul.addr %s437, 8
        %s439 = scalar_lea.vmem %s2, %s438
        %s440 = sadd.s32 %s26, 1
        %s441 = smul.u32 %s440, 4
        %p442 = scmp.lt.s32.totalorder %s441, 11
        %s443 = scalar_select %p442, %s441, 11
      $region64: #{convnext_block.1} parent=51 // pred_fallthru
        _
    $region52: #{convnext_block.1} parent=5 // pred_fallthru
      _
    %p444 = scmp.le.s32.totalorder 1, %s18
    %p445 = scmp.lt.s32.totalorder %s18, 7
    %p446 = pnand %p444, %p445
    %p447 = pneg %p446
    // Predicated region
    $region65: #{convnext_block.1} parent=5 // pred_check
      _
    $region66: #{convnext_block.1} parent=5 // pred_check_branch
      %449 = sbr.rel (%p446) target = $region68
    $region67: #{convnext_block.1} parent=5 // pred_region
      %s450 = ssub.s32 %s18, 1
      %s451 = smul.u32 4, %s28
      %p452 = scmp.lt.s32.totalorder %s27, 1
      %s453 = scalar_select %p452, %s27, 1
      %p454 = scmp.lt.s32.totalorder %s451, 11
      %s455 = scalar_select %p454, %s451, 11
      %s456 = smul.addr %s453, 12
      %s457 = sadd.s32 %s455, %s456
      %s458 = smul.addr %s457, 8
      %s459 = scalar_lea.vmem %s0, %s458
      %p460 = pneg %p58
      %p461 = pneg %p55
      %s462 = smul.u32 %s28, 4
      %s463 = ssub.s32 %s462, 1
      %p464 = scmp.gt.s32.totalorder %s463, 0
      %s465 = scalar_select %p464, %s463, 0
      %p466 = scmp.lt.s32.totalorder %s27, 1
      %s467 = scalar_select %p466, %s27, 1
      %p468 = scmp.lt.s32.totalorder %s465, 11
      %s469 = scalar_select %p468, %s465, 11
      %s470 = smul.addr %s467, 12
      %s471 = sadd.s32 %s469, %s470
      %s472 = smul.addr %s471, 8
      %s473 = scalar_lea.vmem %s1, %s472
      %p474 = pneg %p94
      %p475 = pneg %p91
      %s476 = sadd.s32 %s28, 1
      %s477 = smul.u32 %s476, 4
      %p478 = scmp.lt.s32.totalorder %s477, 11
      %s479 = scalar_select %p478, %s477, 11
      %p480 = scmp.lt.s32.totalorder %s27, 1
      %s481 = scalar_select %p480, %s27, 1
      %p482 = scmp.lt.s32.totalorder %s479, 11
      %s483 = scalar_select %p482, %s479, 11
      %s484 = smul.addr %s481, 12
      %s485 = sadd.s32 %s483, %s484
      %s486 = smul.addr %s485, 8
      %s487 = scalar_lea.vmem %s2, %s486
      %p488 = pneg %p130
      %p489 = pneg %p127
      %p490 = pneg %p151
      %p491 = pneg %p148
      %p492 = pneg %p172
      %p493 = pneg %p169
      %p494 = pneg %p193
      %p495 = pneg %p190
      %p496 = pneg %p214
      %p497 = pneg %p211
      %p498 = pneg %p235
      %p499 = pneg %p232
      %p500 = pneg %p256
      %p501 = pneg %p253
      %p502 = pneg %p277
      %p503 = pneg %p274
      %p504 = pneg %p298
      %p505 = pneg %p295
      %p506 = pneg %p319
      %p507 = pneg %p316
      %p508 = pneg %p347
      %p509 = pneg %p344
      %s510 = smul.u32 4, %s28
      %p511 = scmp.lt.s32.totalorder %s27, 1
      %s512 = scalar_select %p511, %s27, 1
      %p513 = scmp.lt.s32.totalorder %s510, 11
      %s514 = scalar_select %p513, %s510, 11
      %s515 = smul.addr %s512, 12
      %s516 = sadd.s32 %s514, %s515
      %s517 = smul.addr %s516, 8
      %s518 = scalar_lea.vmem %s12, %s517
      %s519 = smul.u32 4, %s28
      %p520 = scmp.lt.s32.totalorder %s27, 1
      %s521 = scalar_select %p520, %s27, 1
      %p522 = scmp.lt.s32.totalorder %s519, 11
      %s523 = scalar_select %p522, %s519, 11
      %s524 = smul.addr %s521, 12
      %s525 = sadd.s32 %s523, %s524
      %s526 = smul.addr %s525, 8
      %s527 = scalar_lea.vmem %s0, %s526
      %s528 = smul.u32 4, %s28
      %s529 = smul.u32 %s28, 4
      %s530 = ssub.s32 %s529, 1
      %p531 = scmp.gt.s32.totalorder %s530, 0
      %s532 = scalar_select %p531, %s530, 0
      %p533 = scmp.lt.s32.totalorder %s27, 1
      %s534 = scalar_select %p533, %s27, 1
      %p535 = scmp.lt.s32.totalorder %s532, 11
      %s536 = scalar_select %p535, %s532, 11
      %s537 = smul.addr %s534, 12
      %s538 = sadd.s32 %s536, %s537
      %s539 = smul.addr %s538, 8
      %s540 = scalar_lea.vmem %s1, %s539
      %s541 = smul.u32 %s28, 4
      %s542 = ssub.s32 %s541, 1
      %p543 = scmp.gt.s32.totalorder %s542, 0
      %s544 = scalar_select %p543, %s542, 0
      %s545 = sadd.s32 %s28, 1
      %s546 = smul.u32 %s545, 4
      %p547 = scmp.lt.s32.totalorder %s546, 11
      %s548 = scalar_select %p547, %s546, 11
      %p549 = scmp.lt.s32.totalorder %s27, 1
      %s550 = scalar_select %p549, %s27, 1
      %p551 = scmp.lt.s32.totalorder %s548, 11
      %s552 = scalar_select %p551, %s548, 11
      %s553 = smul.addr %s550, 12
      %s554 = sadd.s32 %s552, %s553
      %s555 = smul.addr %s554, 8
      %s556 = scalar_lea.vmem %s2, %s555
      %s557 = sadd.s32 %s28, 1
      %s558 = smul.u32 %s557, 4
      %p559 = scmp.lt.s32.totalorder %s558, 11
      %s560 = scalar_select %p559, %s558, 11
      %s561 = smul.u32 4, %s28
      %p562 = scmp.lt.s32.totalorder %s27, 1
      %s563 = scalar_select %p562, %s27, 1
      %p564 = scmp.lt.s32.totalorder %s561, 11
      %s565 = scalar_select %p564, %s561, 11
      %s566 = smul.addr %s563, 12
      %s567 = sadd.s32 %s565, %s566
      %s568 = smul.addr %s567, 8
      %s569 = scalar_lea.vmem %s12, %s568
      %s570 = smul.u32 4, %s28
      %v572 = vld [vmem:[%s527] sm:$0xff]
      %v573 = vld [vmem:[%s527 + $0x8] sm:$0xff]
      %v574 = vld [vmem:[%s527 + $0x10] sm:$0xff]
      %v575 = vld [vmem:[%s527 + $0x18] sm:$0xff]
      %p576 = scmp.gt.s32.totalorder %s28, 0
      %s577 = scalar_select %p576, 1, 0
      %s578 = scvt.s32.f32 %s577
      %p579 = scmp.lt.s32.totalorder %s28, 2
      %s580 = scalar_select %p579, 1, 0
      %s581 = scvt.s32.f32 %s580
      %v582 = vld [vmem:[%s540] sm:$0xff]
      %v583 = vstv %s578
      %v584 = vmul.f32 %v582, %v583
      %v585 = vld [vmem:[%s556] sm:$0xff]
      %v586 = vstv %s581
      %v587 = vmul.f32 %v585, %v586
      %vm588 = vcmask 523269
      %589 = vst.msk [vmem:[#allocation2] sm:$0xe0] %vm588, %v584
      %vm590 = vcmask 523264
      %591 = vst.msk [vmem:[#allocation2 + $0x8] sm:$0xff] %vm590, %v572
      %592 = vst.msk [vmem:[#allocation2 + $0x10] sm:$0xff] %vm590, %v573
      %593 = vst.msk [vmem:[#allocation2 + $0x18] sm:$0xff] %vm590, %v574
      %594 = vst.msk [vmem:[#allocation2 + $0x20] sm:$0xff] %vm590, %v575
      %vm595 = vcmask 518144
      %596 = vst.msk [vmem:[#allocation2 + $0x28] sm:$0x7] %vm595, %v587
      %v597 = vld [vmem:[#allocation2] sm:$0xff]
      %v598 = vld [vmem:[#allocation2 + $0x8] sm:$0xff]
      %v599 = vld [vmem:[#allocation2 + $0x10] sm:$0xff]
      %v600 = vld [vmem:[#allocation2 + $0x18] sm:$0xff]
      %v601 = vld [vmem:[#allocation2 + $0x20] sm:$0xff]
      %v602 = vld [vmem:[#allocation2 + $0x28] sm:$0xff]
      %v603 = vld [vmem:[%s3] sm:$0x7f]
      %v604 = vlaneseq
      %v605 = vshrl.u32 %v604, 7
      %v606 = vsub.s32 0, %v605
      %v607 = vrot.slane %v603, %v606
      %v608 = vmul.f32 %v597, %v607
      %v609 = vmul.f32 %v598, %v607
      %v610 = vmul.f32 %v599, %v607
      %v611 = vmul.f32 %v600, %v607
      %v612 = vmul.f32 %v601, %v607
      %v613 = vlaneseq
      %v614 = vshrl.u32 %v613, 7
      %v615 = vsub.s32 1, %v614
      %v616 = vrot.slane %v603, %v615
      %v617 = vmul.f32 %v597, %v616
      %v618 = vmul.f32 %v598, %v616
      %v619 = vmul.f32 %v599, %v616
      %v620 = vmul.f32 %v600, %v616
      %v621 = vmul.f32 %v601, %v616
      %vm627 = vcmask 1046528
      %v628 = vrot.slane %v617, 1
      %v629 = vrot.slane %v618, 1
      %v630 = vsel %vm627, %v628, %v629
      %v631 = vrot.slane %v619, 1
      %v632 = vsel %vm627, %v629, %v631
      %v633 = vrot.slane %v620, 1
      %v634 = vsel %vm627, %v631, %v633
      %v635 = vrot.slane %v621, 1
      %v636 = vsel %vm627, %v633, %v635
      %v642 = vadd.f32 %v608, %v630
      %v643 = vadd.f32 %v609, %v632
      %v644 = vadd.f32 %v610, %v634
      %v645 = vadd.f32 %v611, %v636
      %v646 = vadd.f32 %v612, %v635
      %v647 = vlaneseq
      %v648 = vshrl.u32 %v647, 7
      %v649 = vsub.s32 2, %v648
      %v650 = vrot.slane %v603, %v649
      %v651 = vmul.f32 %v597, %v650
      %v652 = vmul.f32 %v598, %v650
      %v653 = vmul.f32 %v599, %v650
      %v654 = vmul.f32 %v600, %v650
      %v655 = vmul.f32 %v601, %v650
      %vm661 = vcmask 1045504
      %v662 = vrot.slane %v651, 2
      %v663 = vrot.slane %v652, 2
      %v664 = vsel %vm661, %v662, %v663
      %v665 = vrot.slane %v653, 2
      %v666 = vsel %vm661, %v663, %v665
      %v667 = vrot.slane %v654, 2
      %v668 = vsel %vm661, %v665, %v667
      %v669 = vrot.slane %v655, 2
      %v670 = vsel %vm661, %v667, %v669
      %v676 = vadd.f32 %v642, %v664
      %v677 = vadd.f32 %v643, %v666
      %v678 = vadd.f32 %v644, %v668
      %v679 = vadd.f32 %v645, %v670
      %v680 = vadd.f32 %v646, %v669
      %v681 = vlaneseq
      %v682 = vshrl.u32 %v681, 7
      %v683 = vsub.s32 3, %v682
      %v684 = vrot.slane %v603, %v683
      %v685 = vmul.f32 %v598, %v684
      %v686 = vmul.f32 %v599, %v684
      %v687 = vmul.f32 %v600, %v684
      %v688 = vmul.f32 %v601, %v684
      %vm693 = vcmask 1044480
      %v694 = vrot.slane %v685, 3
      %v695 = vrot.slane %v686, 3
      %v696 = vsel %vm693, %v694, %v695
      %v697 = vrot.slane %v687, 3
      %v698 = vsel %vm693, %v695, %v697
      %v699 = vrot.slane %v688, 3
      %v700 = vsel %vm693, %v697, %v699
      %v706 = vadd.f32 %v676, %v694
      %v707 = vadd.f32 %v677, %v696
      %v708 = vadd.f32 %v678, %v698
      %v709 = vadd.f32 %v679, %v700
      %v710 = vadd.f32 %v680, %v699
      %v711 = vlaneseq
      %v712 = vshrl.u32 %v711, 7
      %v713 = vsub.s32 4, %v712
      %v714 = vrot.slane %v603, %v713
      %v715 = vmul.f32 %v598, %v714
      %v716 = vmul.f32 %v599, %v714
      %v717 = vmul.f32 %v600, %v714
      %v718 = vmul.f32 %v601, %v714
      %v719 = vmul.f32 %v602, %v714
      %vm725 = vcmask 1043456
      %v726 = vrot.slane %v715, 4
      %v727 = vrot.slane %v716, 4
      %v728 = vsel %vm725, %v726, %v727
      %v729 = vrot.slane %v717, 4
      %v730 = vsel %vm725, %v727, %v729
      %v731 = vrot.slane %v718, 4
      %v732 = vsel %vm725, %v729, %v731
      %v733 = vrot.slane %v719, 4
      %v734 = vsel %vm725, %v731, %v733
      %v740 = vadd.f32 %v706, %v726
      %v741 = vadd.f32 %v707, %v728
      %v742 = vadd.f32 %v708, %v730
      %v743 = vadd.f32 %v709, %v732
      %v744 = vadd.f32 %v710, %v734
      %v745 = vlaneseq
      %v746 = vshrl.u32 %v745, 7
      %v747 = vsub.s32 5, %v746
      %v748 = vrot.slane %v603, %v747
      %v749 = vmul.f32 %v598, %v748
      %v750 = vmul.f32 %v599, %v748
      %v751 = vmul.f32 %v600, %v748
      %v752 = vmul.f32 %v601, %v748
      %v753 = vmul.f32 %v602, %v748
      %vm759 = vcmask 1042432
      %v760 = vrot.slane %v749, 5
      %v761 = vrot.slane %v750, 5
      %v762 = vsel %vm759, %v760, %v761
      %v763 = vrot.slane %v751, 5
      %v764 = vsel %vm759, %v761, %v763
      %v765 = vrot.slane %v752, 5
      %v766 = vsel %vm759, %v763, %v765
      %v767 = vrot.slane %v753, 5
      %v768 = vsel %vm759, %v765, %v767
      %v774 = vadd.f32 %v740, %v760
      %v775 = vadd.f32 %v741, %v762
      %v776 = vadd.f32 %v742, %v764
      %v777 = vadd.f32 %v743, %v766
      %v778 = vadd.f32 %v744, %v768
      %v779 = vlaneseq
      %v780 = vshrl.u32 %v779, 7
      %v781 = vsub.s32 6, %v780
      %v782 = vrot.slane %v603, %v781
      %v783 = vmul.f32 %v598, %v782
      %v784 = vmul.f32 %v599, %v782
      %v785 = vmul.f32 %v600, %v782
      %v786 = vmul.f32 %v601, %v782
      %v787 = vmul.f32 %v602, %v782
      %vm793 = vcmask 1041408
      %v794 = vrot.slane %v783, 6
      %v795 = vrot.slane %v784, 6
      %v796 = vsel %vm793, %v794, %v795
      %v797 = vrot.slane %v785, 6
      %v798 = vsel %vm793, %v795, %v797
      %v799 = vrot.slane %v786, 6
      %v800 = vsel %vm793, %v797, %v799
      %v801 = vrot.slane %v787, 6
      %v802 = vsel %vm793, %v799, %v801
      %v808 = vadd.f32 %v774, %v794
      %v809 = vadd.f32 %v775, %v796
      %v810 = vadd.f32 %v776, %v798
      %v811 = vadd.f32 %v777, %v800
      %v812 = vadd.f32 %v778, %v802
      %v813 = vld [vmem:[%s4] sm:$0x1]
      %v815 = vlaneseq
      %v816 = vshrl.u32 %v815, 7
      %v817 = vsub.s32 0, %v816
      %v818 = vrot.slane %v813, %v817
      %v820 = vadd.f32 %v808, %v818
      %v821 = vadd.f32 %v809, %v818
      %v822 = vadd.f32 %v810, %v818
      %v823 = vadd.f32 %v811, %v818
      %v824 = vadd.f32 %v812, %v818
      %v825 = vsel %vm588, %v820, 0.0
      %826 = vadd.xlane.f32.xlu0 %v825
      %v827 = vpop.xlane.xlu0 %826
      %v828 = vsel %vm590, %v821, 0.0
      %829 = vadd.xlane.f32.xlu0 %v828
      %v830 = vpop.xlane.xlu0 %829
      %v831 = vsel %vm590, %v822, 0.0
      %832 = vadd.xlane.f32.xlu0 %v831
      %v833 = vpop.xlane.xlu0 %832
      %v834 = vsel %vm590, %v823, 0.0
      %835 = vadd.xlane.f32.xlu0 %v834
      %v836 = vpop.xlane.xlu0 %835
      %vm837 = vcmask 520192
      %v838 = vsel %vm837, %v824, 0.0
      %839 = vadd.xlane.f32.xlu0 %v838
      %v840 = vpop.xlane.xlu0 %839
      %v841 = vrcp.pop 64.0
      %v842 = vmul.f32 %v827, %v841
      %v843 = vmul.f32 %v830, %v841
      %v844 = vmul.f32 %v833, %v841
      %v845 = vmul.f32 %v836, %v841
      %v846 = vmul.f32 %v840, %v841
      %v847 = vsub.f32 %v820, %v842
      %v848 = vsub.f32 %v821, %v843
      %v849 = vsub.f32 %v822, %v844
      %v850 = vsub.f32 %v823, %v845
      %v851 = vsub.f32 %v824, %v846
      %v852 = vmul.f32 %v847, %v847
      %v853 = vmul.f32 %v848, %v848
      %v854 = vmul.f32 %v849, %v849
      %v855 = vmul.f32 %v850, %v850
      %v856 = vmul.f32 %v851, %v851
      %v857 = vsel %vm588, %v852, 0.0
      %858 = vadd.xlane.f32.xlu0 %v857
      %v859 = vpop.xlane.xlu0 %858
      %v860 = vsel %vm590, %v853, 0.0
      %861 = vadd.xlane.f32.xlu0 %v860
      %v862 = vpop.xlane.xlu0 %861
      %v863 = vsel %vm590, %v854, 0.0
      %864 = vadd.xlane.f32.xlu0 %v863
      %v865 = vpop.xlane.xlu0 %864
      %v866 = vsel %vm590, %v855, 0.0
      %867 = vadd.xlane.f32.xlu0 %v866
      %v868 = vpop.xlane.xlu0 %867
      %v869 = vsel %vm837, %v856, 0.0
      %870 = vadd.xlane.f32.xlu0 %v869
      %v871 = vpop.xlane.xlu0 %870
      %v872 = vmul.f32 %v859, %v841
      %v873 = vmul.f32 %v862, %v841
      %v874 = vmul.f32 %v865, %v841
      %v875 = vmul.f32 %v868, %v841
      %v876 = vmul.f32 %v871, %v841
      %v877 = vadd.f32 %v872, 1e-06
      %v878 = vadd.f32 %v873, 1e-06
      %v879 = vadd.f32 %v874, 1e-06
      %v880 = vadd.f32 %v875, 1e-06
      %v881 = vadd.f32 %v876, 1e-06
      %v882 = vrsqrt.pop %v877
      %v883 = vrsqrt.pop %v878
      %v884 = vrsqrt.pop %v879
      %v885 = vrsqrt.pop %v880
      %v886 = vrsqrt.pop %v881
      %v887 = vmul.f32 %v847, %v882
      %v888 = vmul.f32 %v848, %v883
      %v889 = vmul.f32 %v849, %v884
      %v890 = vmul.f32 %v850, %v885
      %v891 = vmul.f32 %v851, %v886
      %v892 = vld [vmem:[%s5] sm:$0x1]
      %v894 = vlaneseq
      %v895 = vshrl.u32 %v894, 7
      %v896 = vsub.s32 0, %v895
      %v897 = vrot.slane %v892, %v896
      %v899 = vmul.f32 %v887, %v897
      %v900 = vmul.f32 %v888, %v897
      %v901 = vmul.f32 %v889, %v897
      %v902 = vmul.f32 %v890, %v897
      %v903 = vmul.f32 %v891, %v897
      %v904 = vld [vmem:[%s6] sm:$0x1]
      %v906 = vlaneseq
      %v907 = vshrl.u32 %v906, 7
      %v908 = vsub.s32 0, %v907
      %v909 = vrot.slane %v904, %v908
      %v911 = vadd.f32 %v899, %v909
      %v912 = vadd.f32 %v900, %v909
      %v913 = vadd.f32 %v901, %v909
      %v914 = vadd.f32 %v902, %v909
      %v915 = vadd.f32 %v903, %v909
      %v916 = vpack.c.bf16 %v912, %v911
      %v917 = vpack.c.bf16 %v914, %v913
      %v918 = vpack.c.bf16 %v915, %v915
      %v919 = vld [vmem:[%s7] sm:$0xf]
      %v920 = vld [vmem:[%s7 + $0x4] sm:$0xf]
      %v921 = vld [vmem:[%s7 + $0x8] sm:$0xf]
      %v922 = vld [vmem:[%s7 + $0xc] sm:$0xf]
      %v923 = vld [vmem:[%s7 + $0x10] sm:$0xf]
      %v924 = vld [vmem:[%s7 + $0x14] sm:$0xf]
      %v925 = vld [vmem:[%s7 + $0x18] sm:$0xf]
      %v926 = vld [vmem:[%s7 + $0x1c] sm:$0xf]
      %v927 = vld [vmem:[%s8] sm:$0x1]
      %v929 = vlaneseq
      %v930 = vshrl.u32 %v929, 7
      %v931 = vsub.s32 0, %v930
      %v932 = vrot.slane %v927, %v931
      %vm934 = vsmask.f32 5376
      %v936 = vshrl.u32 %v916, 16
      %v938 = vrot.slane %v936, 2
      %v939 = vshll.u32 %v916, 16
      %v941 = vrot.slane %v939, 3
      %v942 = vor.u32 %v938, %v941
      %v944 = vshrl.u32 %v917, 16
      %v946 = vrot.slane %v944, 2
      %v947 = vshll.u32 %v917, 16
      %v949 = vrot.slane %v947, 3
      %v950 = vor.u32 %v946, %v949
      %v951 = vsel %vm934, %v942, %v950
      %v953 = vshrl.u32 %v918, 16
      %v955 = vrot.slane %v953, 2
      %v956 = vshll.u32 %v918, 16
      %v958 = vrot.slane %v956, 3
      %v959 = vor.u32 %v955, %v958
      %v960 = vsel %vm934, %v950, %v959
      %v969 = vunpack.c.l.b16 %v919
      %v970 = vunpack.c.l.b16 %v920
      %v971 = vunpack.c.l.b16 %v921
      %v972 = vunpack.c.l.b16 %v922
      %v973 = vunpack.c.l.b16 %v923
      %v974 = vunpack.c.l.b16 %v924
      %v975 = vunpack.c.l.b16 %v925
      %v976 = vunpack.c.l.b16 %v926
      %v977 = vpack.c.b16 %v970, %v969
      %v978 = vpack.c.b16 %v972, %v971
      %v979 = vpack.c.b16 %v974, %v973
      %v980 = vpack.c.b16 %v976, %v975
      %v986 = vsel %vm590, %v951, 0
      %v989 = vsel %vm590, %v960, 0
      %991 = vmatprep.subr.bf16.mxu0 0
      %992 = vmatpush1.bf16.msra.mxu0 %v977
      %993 = vmatprep.subr.bf16.mxu0 0
      %994 = vmatpush1.bf16.msra.mxu0 %v978
      %995 = vmatprep.subr.bf16.mxu0 0
      %996 = vmatpush1.bf16.msra.mxu0 %v979
      %997 = vmatprep.subr.bf16.mxu0 0
      %998 = vmatpush1.bf16.msra.mxu0 %v980
      %999 = vmatprep.subr.bf16.mxu0 0
      %1000 = vmatpush1.bf16.msra.mxu0 0
      %1001 = vmatprep.subr.bf16.mxu0 0
      %1002 = vmatpush1.bf16.msra.mxu0 0
      %1003 = vmatprep.subr.bf16.mxu0 0
      %1004 = vmatpush1.bf16.msra.mxu0 0
      %1005 = vmatprep.subr.bf16.mxu0 0
      %1006 = vmatpush1.bf16.msra.mxu0 0
      %1007 = vmatprep.subr.bf16.mxu0 0
      %1008 = vmatpush1.bf16.msra.mxu0 0
      %1009 = vmatprep.subr.bf16.mxu0 0
      %1010 = vmatpush1.bf16.msra.mxu0 0
      %1011 = vmatprep.subr.bf16.mxu0 0
      %1012 = vmatpush1.bf16.msra.mxu0 0
      %1013 = vmatprep.subr.bf16.mxu0 0
      %1014 = vmatpush1.bf16.msra.mxu0 0
      %1015 = vmatprep.subr.bf16.mxu0 0
      %1016 = vmatpush1.bf16.msra.mxu0 0
      %1017 = vmatprep.subr.bf16.mxu0 0
      %1018 = vmatpush1.bf16.msra.mxu0 0
      %1019 = vmatprep.subr.bf16.mxu0 0
      %1020 = vmatpush1.bf16.msra.mxu0 0
      %1021 = vmatprep.subr.bf16.mxu0 0
      %1022 = vmatpush1.bf16.msra.mxu0 0
      %1023 = vmatprep.mubr.bf16.mxu0 0
      %1024 = vmatmul.mubr.bf16.gmra.mrb[0].mxu0 %v986
      %v1025 = vpop.f32.mrb[0].mxu0
      %v1026 = vadd.f32 %v932, %v1025
      %v1027 = vpop.f32.mrb[0].mxu0
      %v1028 = vpop.f32.mrb[0].mxu0
      %v1029 = vadd.f32 %v932, %v1028
      %v1030 = vpop.f32.mrb[0].mxu0
      %1031 = vmatprep.mubr.bf16.mxu0 0
      %1032 = vmatmul.mubr.bf16.gmra.mrb[0].mxu0 %v989
      %v1033 = vpop.f32.mrb[0].mxu0
      %v1034 = vadd.f32 %v932, %v1033
      %v1035 = vpop.f32.mrb[0].mxu0
      %v1036 = vpop.f32.mrb[0].mxu0
      %v1037 = vadd.f32 %v932, %v1036
      %v1038 = vpop.f32.mrb[0].mxu0
      %1039 = vdwg.mxu0
      %v1040 = vmul.f32 %v1026, 0.5
      %v1041 = vmul.f32 %v1029, 0.5
      %v1042 = vmul.f32 %v1034, 0.5
      %v1043 = vmul.f32 %v1037, 0.5
      %v1044 = vmul.f32 %v1026, 0.70710677
      %v1045 = vmul.f32 %v1029, 0.70710677
      %v1046 = vmul.f32 %v1034, 0.70710677
      %v1047 = vmul.f32 %v1037, 0.70710677
      %v1048 = verf.f32.pop %v1044
      %v1049 = verf.f32.pop %v1045
      %v1050 = verf.f32.pop %v1046
      %v1051 = verf.f32.pop %v1047
      %v1052 = vadd.f32 %v1048, 1.0
      %v1053 = vadd.f32 %v1049, 1.0
      %v1054 = vadd.f32 %v1050, 1.0
      %v1055 = vadd.f32 %v1051, 1.0
      %v1056 = vmul.f32 %v1040, %v1052
      %v1057 = vmul.f32 %v1041, %v1053
      %v1058 = vmul.f32 %v1042, %v1054
      %v1059 = vmul.f32 %v1043, %v1055
      %v1060 = vpack.c.bf16 %v1057, %v1056
      %v1061 = vpack.c.bf16 %v1059, %v1058
      %v1062 = vld [vmem:[%s9] sm:$0xf]
      %v1063 = vld [vmem:[%s9 + $0x4] sm:$0xf]
      %v1064 = vld [vmem:[%s9 + $0x8] sm:$0xf]
      %v1065 = vld [vmem:[%s9 + $0xc] sm:$0xf]
      %v1066 = vld [vmem:[%s9 + $0x10] sm:$0xf]
      %v1067 = vld [vmem:[%s9 + $0x14] sm:$0xf]
      %v1068 = vld [vmem:[%s9 + $0x18] sm:$0xf]
      %v1069 = vld [vmem:[%s9 + $0x1c] sm:$0xf]
      %v1070 = vld [vmem:[%s9 + $0x20] sm:$0xf]
      %v1071 = vld [vmem:[%s9 + $0x24] sm:$0xf]
      %v1072 = vld [vmem:[%s9 + $0x28] sm:$0xf]
      %v1073 = vld [vmem:[%s9 + $0x2c] sm:$0xf]
      %v1074 = vld [vmem:[%s9 + $0x30] sm:$0xf]
      %v1075 = vld [vmem:[%s9 + $0x34] sm:$0xf]
      %v1076 = vld [vmem:[%s9 + $0x38] sm:$0xf]
      %v1077 = vld [vmem:[%s9 + $0x3c] sm:$0xf]
      %v1078 = vld [vmem:[%s10] sm:$0x1]
      %v1080 = vlaneseq
      %v1081 = vshrl.u32 %v1080, 7
      %v1082 = vsub.s32 0, %v1081
      %v1083 = vrot.slane %v1078, %v1082
      %v1101 = vunpack.c.l.b16 %v1062
      %v1102 = vunpack.c.l.b16 %v1063
      %v1103 = vunpack.c.l.b16 %v1064
      %v1104 = vunpack.c.l.b16 %v1065
      %v1105 = vunpack.c.l.b16 %v1066
      %v1106 = vunpack.c.l.b16 %v1067
      %v1107 = vunpack.c.l.b16 %v1068
      %v1108 = vunpack.c.l.b16 %v1069
      %v1109 = vunpack.c.l.b16 %v1070
      %v1110 = vunpack.c.l.b16 %v1071
      %v1111 = vunpack.c.l.b16 %v1072
      %v1112 = vunpack.c.l.b16 %v1073
      %v1113 = vunpack.c.l.b16 %v1074
      %v1114 = vunpack.c.l.b16 %v1075
      %v1115 = vunpack.c.l.b16 %v1076
      %v1116 = vunpack.c.l.b16 %v1077
      %v1117 = vpack.c.b16 %v1102, %v1101
      %v1118 = vpack.c.b16 %v1104, %v1103
      %v1119 = vpack.c.b16 %v1106, %v1105
      %v1120 = vpack.c.b16 %v1108, %v1107
      %v1121 = vpack.c.b16 %v1110, %v1109
      %v1122 = vpack.c.b16 %v1112, %v1111
      %v1123 = vpack.c.b16 %v1114, %v1113
      %v1124 = vpack.c.b16 %v1116, %v1115
      %1133 = vmatprep.subr.bf16.mxu0 0
      %1134 = vmatpush1.bf16.msra.mxu0 %v1117
      %1135 = vmatprep.subr.bf16.mxu0 0
      %1136 = vmatpush1.bf16.msra.mxu0 %v1118
      %1137 = vmatprep.subr.bf16.mxu0 0
      %1138 = vmatpush1.bf16.msra.mxu0 %v1119
      %1139 = vmatprep.subr.bf16.mxu0 0
      %1140 = vmatpush1.bf16.msra.mxu0 %v1120
      %1141 = vmatprep.subr.bf16.mxu0 0
      %1142 = vmatpush1.bf16.msra.mxu0 %v1121
      %1143 = vmatprep.subr.bf16.mxu0 0
      %1144 = vmatpush1.bf16.msra.mxu0 %v1122
      %1145 = vmatprep.subr.bf16.mxu0 0
      %1146 = vmatpush1.bf16.msra.mxu0 %v1123
      %1147 = vmatprep.subr.bf16.mxu0 0
      %1148 = vmatpush1.bf16.msra.mxu0 %v1124
      %1149 = vmatprep.subr.bf16.mxu0 0
      %1150 = vmatpush1.bf16.msra.mxu0 0
      %1151 = vmatprep.subr.bf16.mxu0 0
      %1152 = vmatpush1.bf16.msra.mxu0 0
      %1153 = vmatprep.subr.bf16.mxu0 0
      %1154 = vmatpush1.bf16.msra.mxu0 0
      %1155 = vmatprep.subr.bf16.mxu0 0
      %1156 = vmatpush1.bf16.msra.mxu0 0
      %1157 = vmatprep.subr.bf16.mxu0 0
      %1158 = vmatpush1.bf16.msra.mxu0 0
      %1159 = vmatprep.subr.bf16.mxu0 0
      %1160 = vmatpush1.bf16.msra.mxu0 0
      %1161 = vmatprep.subr.bf16.mxu0 0
      %1162 = vmatpush1.bf16.msra.mxu0 0
      %1163 = vmatprep.subr.bf16.mxu0 0
      %1164 = vmatpush1.bf16.msra.mxu0 0
      %1165 = vmatprep.mubr.bf16.mxu0 0
      %1166 = vmatmul.mubr.bf16.gmra.mrb[0].mxu0 %v1060
      %v1167 = vpop.f32.mrb[0].mxu0
      %v1168 = vadd.f32 %v1083, %v1167
      %v1169 = vpop.f32.mrb[0].mxu0
      %v1170 = vpop.f32.mrb[0].mxu0
      %v1171 = vadd.f32 %v1083, %v1170
      %v1172 = vpop.f32.mrb[0].mxu0
      %1173 = vmatprep.mubr.bf16.mxu0 0
      %1174 = vmatmul.mubr.bf16.gmra.mrb[0].mxu0 %v1061
      %v1175 = vpop.f32.mrb[0].mxu0
      %v1176 = vadd.f32 %v1083, %v1175
      %v1177 = vpop.f32.mrb[0].mxu0
      %v1178 = vpop.f32.mrb[0].mxu0
      %v1179 = vadd.f32 %v1083, %v1178
      %v1180 = vpop.f32.mrb[0].mxu0
      %1181 = vdwg.mxu0
      %v1182 = vld [vmem:[%s11] sm:$0x1]
      %v1184 = vlaneseq
      %v1185 = vshrl.u32 %v1184, 7
      %v1186 = vsub.s32 0, %v1185
      %v1187 = vrot.slane %v1182, %v1186
      %v1189 = vmul.f32 %v1168, %v1187
      %v1190 = vmul.f32 %v1171, %v1187
      %v1191 = vmul.f32 %v1176, %v1187
      %v1192 = vmul.f32 %v1179, %v1187
      %v1193 = vadd.f32 %v572, %v1189
      %v1194 = vadd.f32 %v573, %v1190
      %v1195 = vadd.f32 %v574, %v1191
      %v1196 = vadd.f32 %v575, %v1192
      %1197 = vst.msk [vmem:[%s569] sm:$0xff] %vm590, %v1193
      %1198 = vst.msk [vmem:[%s569 + $0x8] sm:$0xff] %vm590, %v1194
      %1199 = vst.msk [vmem:[%s569 + $0x10] sm:$0xff] %vm590, %v1195
      %1200 = vst.msk [vmem:[%s569 + $0x18] sm:$0xff] %vm590, %v1196
      %s1201 = smul.u32 4, %s28
      %p1202 = scmp.lt.s32.totalorder %s27, 1
      %s1203 = scalar_select %p1202, %s27, 1
      %p1204 = scmp.lt.s32.totalorder %s1201, 11
      %s1205 = scalar_select %p1204, %s1201, 11
      %s1206 = smul.addr %s1203, 12
      %s1207 = sadd.s32 %s1205, %s1206
      %s1208 = smul.addr %s1207, 8
      %s1209 = scalar_lea.vmem %s12, %s1208
      // Predicated region
      $region69: #{convnext_block.1} parent=67 // pred_check
        %p1210 = pneg %p344
      $region70: #{convnext_block.1} parent=67 // pred_check_branch
        %1212 = sbr.rel (%p1210) target = $region72
      $region71: #{convnext_block.1} parent=67 // pred_region
        %s1213 = smul.u32 4, %s28
      $region72: #{convnext_block.1} parent=67 // pred_fallthru
        _
    $region68: #{convnext_block.1} parent=5 // pred_fallthru
      _
    %p1214 = scmp.le.s32.totalorder 2, %s18
    // Predicated region
    $region73: #{convnext_block.1} parent=5 // pred_check
      %p1215 = pneg %p1214
    $region74: #{convnext_block.1} parent=5 // pred_check_branch
      %1217 = sbr.rel (%p1215) target = $region76
    $region75: #{convnext_block.1} parent=5 // pred_region
      %s1218 = ssub.s32 %s18, 2
      // Predicated region
      $region77: #{convnext_block.1} parent=75 // pred_check
        %p1219 = pneg %p350
      $region78: #{convnext_block.1} parent=75 // pred_check_branch
        %1221 = sbr.rel (%p1219) target = $region80
      $region79: #{convnext_block.1} parent=75 // pred_region
        %s1222 = smul.u32 4, %s30
        %p1223 = scmp.lt.s32.totalorder %s29, 1
        %s1224 = scalar_select %p1223, %s29, 1
        %p1225 = scmp.lt.s32.totalorder %s1222, 11
        %s1226 = scalar_select %p1225, %s1222, 11
        %s1227 = smul.addr %s1224, 12
        %s1228 = sadd.s32 %s1226, %s1227
        %s1229 = smul.addr %s1228, 8
        %s1230 = scalar_lea.vmem %s12, %s1229
      $region80: #{convnext_block.1} parent=75 // pred_fallthru
        _
    $region76: #{convnext_block.1} parent=5 // pred_fallthru
      _
  $region6: #{convnext_block.1} parent=0 // loop_footer
    %s22 = sadd.s32 1, %s18
  $region7: #{convnext_block.1} parent=0 // loop_footer_branch
    %17 = sbr.rel target = $region3
  $region8: #{convnext_block.1} parent=0 // loop_exit
    _

</llo_original>
